<compile_context>
chip_gen: v5e
topology: v5e:2x2
jax: 0.10.0
libtpu: 0.0.40
codegen_flags: <defaults>
</compile_context>

<pallas_src>
import numpy as np
import jax
import jax.numpy as jnp
from jax.experimental import pallas as pl
from jax.experimental.pallas import tpu as pltpu


# ---------------- config (small, consistent with the module) ----------------
def find_multiple(n: int, k: int) -> int:
    return n if n % k == 0 else n + k - n % k


N_HEAD = 4
N_EMBD_PER_HEAD = 32
C = N_HEAD * N_EMBD_PER_HEAD                              # 128
HIDDEN_DIM = 4 * C                                        # 512
N_HIDDEN = find_multiple(int(2 * HIDDEN_DIM / 3), 256)    # find_multiple(341, 256) = 512
B, T = 2, 8                                               # batch, sequence


# ---------------- Pallas kernel: one rows-tile of the full MLP ----------------
def _mlp_kernel(x_ref, w12_ref, wproj_ref, out_ref):
    # x_ref:     (TM, C)           f32   activation tile
    # w12_ref:   (C, 2*N_HIDDEN)   bf16  fused [c_fc1^T | c_fc2^T]  (VMEM-resident)
    # wproj_ref: (N_HIDDEN, C)     bf16  c_proj^T                   (VMEM-resident)
    # out_ref:   (TM, C)           f32
    xb = x_ref[...].astype(jnp.bfloat16)                                   # MXU-native input
    ab = jnp.dot(xb, w12_ref[...], preferred_element_type=jnp.float32)     # (TM, 2*NH) f32
    a = ab[:, :N_HIDDEN]                                                   # c_fc1(x)
    b = ab[:, N_HIDDEN:]                                                   # c_fc2(x)
    g = (a * jax.nn.sigmoid(a)) * b                                        # SiLU gate in f32
    out_ref[...] = jnp.dot(g.astype(jnp.bfloat16), wproj_ref[...],
                           preferred_element_type=jnp.float32)             # c_proj


def mlp_forward(x, w12_t, wproj_t, *, block_rows=256):
    """x: (..., C) float32. w12_t: (C, 2*N_HIDDEN) bf16. wproj_t: (N_HIDDEN, C) bf16."""
    *lead, c = x.shape
    assert c == C
    rows = int(np.prod(lead))

    # Rows tile: multiple of 8 sublanes, capped at block_rows; pad rows to a whole tile count.
    tm = min(block_rows, find_multiple(rows, 8))
    rows_p = find_multiple(rows, tm)
    xf = x.reshape(rows, c)
    if rows_p != rows:
        xf = jnp.pad(xf, ((0, rows_p - rows), (0, 0)))
    grid = (rows_p // tm,)

    flops = 2 * rows_p * c * (2 * N_HIDDEN) + 2 * rows_p * N_HIDDEN * c
    bytes_accessed = (rows_p * c * 4          # x (f32 in)
                      + rows_p * c * 4        # out (f32)
                      + w12_t.size * 2        # bf16 weights
                      + wproj_t.size * 2)

    out = pl.pallas_call(
        _mlp_kernel,
        out_shape=jax.ShapeDtypeStruct((rows_p, c), jnp.float32),
        grid=grid,
        in_specs=[
            pl.BlockSpec((tm, c), lambda i: (i, 0)),                 # activation tile per step
            pl.BlockSpec((c, 2 * N_HIDDEN), lambda i: (0, 0)),       # weights: constant block
            pl.BlockSpec((N_HIDDEN, c), lambda i: (0, 0)),           # weights: constant block
        ],
        out_specs=pl.BlockSpec((tm, c), lambda i: (i, 0)),
        compiler_params=pltpu.CompilerParams(
            dimension_semantics=("parallel",)),                      # rows are independent
        cost_estimate=pl.CostEstimate(
            flops=flops,
            transcendentals=rows_p * N_HIDDEN,
            bytes_accessed=bytes_accessed),
    )(xf, w12_t, wproj_t)

    return out[:rows].reshape(*lead, c)


# ---------------- pure-JAX f32 reference (exact module semantics) ----------------
def _reference(x, w1, w2, wp):
    # PyTorch layout: w1, w2: (N_HIDDEN, C); wp: (C, N_HIDDEN); Linear does x @ W^T
    a = x @ w1.T
    b = x @ w2.T
    return (jax.nn.silu(a) * b) @ wp.T


# ---------------- deterministic setup, run, check ----------------
if __name__ == "__main__":
    key = jax.random.PRNGKey(0)
    kx, k1, k2, k3 = jax.random.split(key, 4)
    std = 0.02
    x = jax.random.normal(kx, (B, T, C), jnp.float32)
    w1 = std * jax.random.normal(k1, (N_HIDDEN, C), jnp.float32)   # c_fc1.weight (out, in)
    w2 = std * jax.random.normal(k2, (N_HIDDEN, C), jnp.float32)   # c_fc2.weight (out, in)
    wp = std * jax.random.normal(k3, (C, N_HIDDEN), jnp.float32)   # c_proj.weight (out, in)

    # Fused, pre-transposed (in, out) bf16 weights for the kernel (prepared once at load time;
    # keeping them resident across calls / fusing with adjacent ops is a call-site concern).
    w12_t = jnp.concatenate([w1.T, w2.T], axis=1).astype(jnp.bfloat16)   # (C, 2*N_HIDDEN)
    wproj_t = wp.T.astype(jnp.bfloat16)                                  # (N_HIDDEN, C)

    out = jax.block_until_ready(mlp_forward(x, w12_t, wproj_t))
    ref = jax.block_until_ready(_reference(x, w1, w2, wp))

    # bf16 matmul inputs with f32 accumulation vs. pure-f32 reference -> small quantization error.
    np.testing.assert_allclose(np.asarray(out), np.asarray(ref), rtol=2e-2, atol=3e-3)

    print("KERNEL_OK")
</pallas_src>

<mosaic_0001>
module attributes {stable_mosaic.version = 11 : i64} {
  func.func @_mlp_kernel(%arg0: i32, %arg1: memref<16x128xf32, #tpu.memory_space<vmem>>, %arg2: memref<128x1024xbf16, #tpu.memory_space<vmem>>, %arg3: memref<512x128xbf16, #tpu.memory_space<vmem>>, %arg4: memref<16x128xf32, #tpu.memory_space<vmem>>) attributes {dimension_semantics = [#tpu.dimension_semantics<parallel>], iteration_bounds = array<i64: 1>, scalar_prefetch = 0 : i64, scratch_operands = 0 : i64, tpu.core_type = #tpu.core_type<tc>, window_params = [{transform_indices = @transform_0, window_bounds = array<i64: 16, 128>}, {pipeline_mode = #tpu.pipeline_mode<synchronous>, transform_indices = @transform_1, window_bounds = array<i64: 128, 1024>}, {pipeline_mode = #tpu.pipeline_mode<synchronous>, transform_indices = @transform_2, window_bounds = array<i64: 512, 128>}, {transform_indices = @transform_3, window_bounds = array<i64: 16, 128>}]} {
    %c0 = arith.constant 0 : index
    %c0_0 = arith.constant 0 : index
    %0 = vector.load %arg1[%c0, %c0_0] : memref<16x128xf32, #tpu.memory_space<vmem>>, vector<16x128xf32>
    %1 = arith.truncf %0 : vector<16x128xf32> to vector<16x128xbf16>
    %c0_1 = arith.constant 0 : index
    %c0_2 = arith.constant 0 : index
    %2 = vector.load %arg2[%c0_1, %c0_2] : memref<128x1024xbf16, #tpu.memory_space<vmem>>, vector<128x1024xbf16>
    %cst = arith.constant dense<0.000000e+00> : vector<16x1024xf32>
    %3 = tpu.matmul %1, %2, %cst {dimension_numbers = #tpu.dot_dimension_numbers<[1], [0], [0], [1], [0, 0, 1, 1], [], []>} : vector<16x128xbf16>, vector<128x1024xbf16>, vector<16x1024xf32> -> vector<16x1024xf32>
    %4 = vector.extract_strided_slice %3 {offsets = [0, 0], sizes = [16, 512], strides = [1, 1]} : vector<16x1024xf32> to vector<16x512xf32>
    %5 = vector.extract_strided_slice %3 {offsets = [0, 512], sizes = [16, 512], strides = [1, 1]} : vector<16x1024xf32> to vector<16x512xf32>
    %6 = arith.negf %4 : vector<16x512xf32>
    %7 = math.exp %6 : vector<16x512xf32>
    %cst_3 = arith.constant 1.000000e+00 : f32
    %8 = vector.broadcast %cst_3 : f32 to vector<16x512xf32>
    %9 = arith.addf %8, %7 : vector<16x512xf32>
    %10 = arith.divf %8, %9 : vector<16x512xf32>
    %11 = arith.mulf %4, %10 : vector<16x512xf32>
    %12 = arith.mulf %11, %5 : vector<16x512xf32>
    %13 = arith.truncf %12 : vector<16x512xf32> to vector<16x512xbf16>
    %c0_4 = arith.constant 0 : index
    %c0_5 = arith.constant 0 : index
    %14 = vector.load %arg3[%c0_4, %c0_5] : memref<512x128xbf16, #tpu.memory_space<vmem>>, vector<512x128xbf16>
    %cst_6 = arith.constant dense<0.000000e+00> : vector<16x128xf32>
    %15 = tpu.matmul %13, %14, %cst_6 {dimension_numbers = #tpu.dot_dimension_numbers<[1], [0], [0], [1], [0, 0, 1, 1], [], []>} : vector<16x512xbf16>, vector<512x128xbf16>, vector<16x128xf32> -> vector<16x128xf32>
    %c0_7 = arith.constant 0 : index
    %c0_8 = arith.constant 0 : index
    %16 = vector.load %arg4[%c0_7, %c0_8] : memref<16x128xf32, #tpu.memory_space<vmem>>, vector<16x128xf32>
    tpu.vector_store %arg4[%c0_7, %c0_8], %15 {strides = array<i32>} : memref<16x128xf32, #tpu.memory_space<vmem>>, vector<16x128xf32>,
    return
  }
  func.func @transform_0(%arg0: i32) -> (i32, i32) {
    %c0_i32 = arith.constant 0 : i32
    %c0_i32_0 = arith.constant 0 : i32
    return %arg0, %c0_i32 : i32, i32
  }
  func.func @transform_1(%arg0: i32) -> (i32, i32) {
    %c0_i32 = arith.constant 0 : i32
    %c0_i32_0 = arith.constant 0 : i32
    %c0_i32_1 = arith.constant 0 : i32
    return %c0_i32, %c0_i32_0 : i32, i32
  }
  func.func @transform_2(%arg0: i32) -> (i32, i32) {
    %c0_i32 = arith.constant 0 : i32
    %c0_i32_0 = arith.constant 0 : i32
    %c0_i32_1 = arith.constant 0 : i32
    return %c0_i32, %c0_i32_0 : i32, i32
  }
  func.func @transform_3(%arg0: i32) -> (i32, i32) {
    %c0_i32 = arith.constant 0 : i32
    %c0_i32_0 = arith.constant 0 : i32
    return %arg0, %c0_i32 : i32, i32
  }
}

</mosaic_0001>

<llo_original>
// kernel: tpu_custom_call.1
$region0: #{tpu_custom_call.1}
  #allocation0 [shape = 'u32[]', space=smem, size = 0x4, offset = 0x4, fixed_abs, tag = 'smem constant byte address 0x4 - core index']
  #allocation1 [shape = 'u32[72,128]{1,0:T(1,128)}', space=vmem, size = 0x9000, scoped, tag = 'internal scratch']
  %s0 = inlined_call_operand.hbm [shape: f32[16,128], index: 0, kind: input, shape index: {}]
  %s1 = inlined_call_operand.hbm [shape: bf16[128,1024], index: 1, kind: input, shape index: {}]
  %s2 = inlined_call_operand.hbm [shape: bf16[512,128], index: 2, kind: input, shape index: {}]
  %s3 = inlined_call_operand.hbm [shape: f32[16,128], index: 3, kind: output, shape index: {}]
  %s4 = sld [smem:[#allocation0]]
  $region34: #{tpu_custom_call.1} parent=0
    _
  %s6 = ssub.s32 1, %s4
  %s7 = scalar_select 0, %s6, %s4
  $region1: #{tpu_custom_call.1} parent=0
    #allocation2 [shape = 'u8[8192]{0}', space=vmem, size = 0x2000, scoped, tag = 'input window, operand 0, single buffered']
    #allocation3 [shape = 's32[1]{0}', space=sflag, size = 0x4, scoped, tag = 'scoped memory for tpu_custom_call.1']
    #allocation4 [shape = 's32[1]{0}', space=sflag, size = 0x4, scoped, tag = 'scoped memory for tpu_custom_call.1']
    #allocation5 [shape = 'u8[262144]{0}', space=vmem, size = 0x40000, scoped, tag = 'input window, operand 1, single buffered']
    #allocation6 [shape = 's32[1]{0}', space=sflag, size = 0x4, scoped, tag = 'scoped memory for tpu_custom_call.1']
    #allocation7 [shape = 'u8[131072]{0}', space=vmem, size = 0x20000, scoped, tag = 'input window, operand 2, single buffered']
    #allocation8 [shape = 'u8[8192]{0}', space=vmem, size = 0x2000, scoped, tag = 'output window, operand 0, single buffered']
    %8 = vsyncpa [#allocation3], 0
    %9 = vsyncpa [#allocation6], 0
    %10 = vsyncpa [#allocation4], 0
    // Predicated region
    $region2: #{tpu_custom_call.1} parent=1 // pred_check
      _
    $region3: #{tpu_custom_call.1} parent=1 // pred_check_branch
      %12 = sbr.rel (0) target = $region5
    $region4: #{tpu_custom_call.1} parent=1 // pred_region
      %14 = vsyncadd [#allocation3], 0
      %s15 = sshll.u32 %s0, 4
      %s16 = int_to_ptr.hbm [resolvable:$true] %s15
      %s17 = sshll.u32 [#allocation2], 4
      %s18 = int_to_ptr.vmem [resolvable:$true] %s17
      %23 = dma.hbm_to_vmem [thread:$0]  %s16, 256, %s18, [#allocation3], 128, 128, 8
    $region5: #{tpu_custom_call.1} parent=1 // pred_fallthru
      _
    // Predicated region
    $region6: #{tpu_custom_call.1} parent=1 // pred_check
      _
    $region7: #{tpu_custom_call.1} parent=1 // pred_check_branch
      %25 = sbr.rel (0) target = $region9
    $region8: #{tpu_custom_call.1} parent=1 // pred_region
      %27 = vsyncadd [#allocation6], 0
      %s28 = sshll.u32 %s1, 4
      %s29 = int_to_ptr.hbm [resolvable:$true] %s28
      %s30 = sshll.u32 [#allocation5], 4
      %s31 = int_to_ptr.vmem [resolvable:$true] %s30
      %36 = dma.hbm_to_vmem [thread:$0]  %s29, 8192, %s31, [#allocation6], 512, 512, 32
    $region9: #{tpu_custom_call.1} parent=1 // pred_fallthru
      _
    // Predicated region
    $region10: #{tpu_custom_call.1} parent=1 // pred_check
      _
    $region11: #{tpu_custom_call.1} parent=1 // pred_check_branch
      %38 = sbr.rel (0) target = $region13
    $region12: #{tpu_custom_call.1} parent=1 // pred_region
      %40 = vsyncadd [#allocation6], 0
      %s41 = sshll.u32 %s2, 4
      %s42 = int_to_ptr.hbm [resolvable:$true] %s41
      %s43 = sshll.u32 [#allocation7], 4
      %s44 = int_to_ptr.vmem [resolvable:$true] %s43
      %49 = dma.hbm_to_vmem [thread:$0]  %s42, 4096, %s44, [#allocation6], 64, 64, 4
    $region13: #{tpu_custom_call.1} parent=1 // pred_fallthru
      _
    // Predicated region
    $region14: #{tpu_custom_call.1} parent=1 // pred_check
      _
    $region15: #{tpu_custom_call.1} parent=1 // pred_check_branch
      %51 = sbr.rel (0) target = $region17
    $region16: #{tpu_custom_call.1} parent=1 // pred_region
      %53 = dma.done [#allocation3], 256
    $region17: #{tpu_custom_call.1} parent=1 // pred_fallthru
      _
    // Predicated region
    $region18: #{tpu_custom_call.1} parent=1 // pred_check
      _
    $region19: #{tpu_custom_call.1} parent=1 // pred_check_branch
      %55 = sbr.rel (0) target = $region21
    $region20: #{tpu_custom_call.1} parent=1 // pred_region
      %57 = dma.done [#allocation6], 8192
    $region21: #{tpu_custom_call.1} parent=1 // pred_fallthru
      _
    // Predicated region
    $region22: #{tpu_custom_call.1} parent=1 // pred_check
      _
    $region23: #{tpu_custom_call.1} parent=1 // pred_check_branch
      %59 = sbr.rel (0) target = $region25
    $region24: #{tpu_custom_call.1} parent=1 // pred_region
      %61 = dma.done [#allocation6], 4096
    $region25: #{tpu_custom_call.1} parent=1 // pred_fallthru
      _
    %v62 = vld [vmem:[#allocation2] sm:$0xff]
    %v63 = vld [vmem:[#allocation2 + $0x8] sm:$0xff]
    %v64 = vpack.c.bf16 %v63, %v62
    %v65 = vld [vmem:[#allocation5] sm:$0xff]
    %v66 = vld [vmem:[#allocation5 + $0x8] sm:$0xff]
    %v67 = vld [vmem:[#allocation5 + $0x10] sm:$0xff]
    %v68 = vld [vmem:[#allocation5 + $0x18] sm:$0xff]
    %v69 = vld [vmem:[#allocation5 + $0x20] sm:$0xff]
    %v70 = vld [vmem:[#allocation5 + $0x28] sm:$0xff]
    %v71 = vld [vmem:[#allocation5 + $0x30] sm:$0xff]
    %v72 = vld [vmem:[#allocation5 + $0x38] sm:$0xff]
    %v73 = vld [vmem:[#allocation5 + $0x40] sm:$0xff]
    %v74 = vld [vmem:[#allocation5 + $0x48] sm:$0xff]
    %v75 = vld [vmem:[#allocation5 + $0x50] sm:$0xff]
    %v76 = vld [vmem:[#allocation5 + $0x58] sm:$0xff]
    %v77 = vld [vmem:[#allocation5 + $0x60] sm:$0xff]
    %v78 = vld [vmem:[#allocation5 + $0x68] sm:$0xff]
    %v79 = vld [vmem:[#allocation5 + $0x70] sm:$0xff]
    %v80 = vld [vmem:[#allocation5 + $0x78] sm:$0xff]
    %v81 = vld [vmem:[#allocation5 + $0x80] sm:$0xff]
    %v82 = vld [vmem:[#allocation5 + $0x88] sm:$0xff]
    %v83 = vld [vmem:[#allocation5 + $0x90] sm:$0xff]
    %v84 = vld [vmem:[#allocation5 + $0x98] sm:$0xff]
    %v85 = vld [vmem:[#allocation5 + $0xa0] sm:$0xff]
    %v86 = vld [vmem:[#allocation5 + $0xa8] sm:$0xff]
    %v87 = vld [vmem:[#allocation5 + $0xb0] sm:$0xff]
    %v88 = vld [vmem:[#allocation5 + $0xb8] sm:$0xff]
    %v89 = vld [vmem:[#allocation5 + $0xc0] sm:$0xff]
    %v90 = vld [vmem:[#allocation5 + $0xc8] sm:$0xff]
    %v91 = vld [vmem:[#allocation5 + $0xd0] sm:$0xff]
    %v92 = vld [vmem:[#allocation5 + $0xd8] sm:$0xff]
    %v93 = vld [vmem:[#allocation5 + $0xe0] sm:$0xff]
    %v94 = vld [vmem:[#allocation5 + $0xe8] sm:$0xff]
    %v95 = vld [vmem:[#allocation5 + $0xf0] sm:$0xff]
    %v96 = vld [vmem:[#allocation5 + $0xf8] sm:$0xff]
    %v97 = vld [vmem:[#allocation5 + $0x100] sm:$0xff]
    %v98 = vld [vmem:[#allocation5 + $0x108] sm:$0xff]
    %v99 = vld [vmem:[#allocation5 + $0x110] sm:$0xff]
    %v100 = vld [vmem:[#allocation5 + $0x118] sm:$0xff]
    %v101 = vld [vmem:[#allocation5 + $0x120] sm:$0xff]
    %v102 = vld [vmem:[#allocation5 + $0x128] sm:$0xff]
    %v103 = vld [vmem:[#allocation5 + $0x130] sm:$0xff]
    %v104 = vld [vmem:[#allocation5 + $0x138] sm:$0xff]
    %v105 = vld [vmem:[#allocation5 + $0x140] sm:$0xff]
    %v106 = vld [vmem:[#allocation5 + $0x148] sm:$0xff]
    %v107 = vld [vmem:[#allocation5 + $0x150] sm:$0xff]
    %v108 = vld [vmem:[#allocation5 + $0x158] sm:$0xff]
    %v109 = vld [vmem:[#allocation5 + $0x160] sm:$0xff]
    %v110 = vld [vmem:[#allocation5 + $0x168] sm:$0xff]
    %v111 = vld [vmem:[#allocation5 + $0x170] sm:$0xff]
    %v112 = vld [vmem:[#allocation5 + $0x178] sm:$0xff]
    %v113 = vld [vmem:[#allocation5 + $0x180] sm:$0xff]
    %v114 = vld [vmem:[#allocation5 + $0x188] sm:$0xff]
    %v115 = vld [vmem:[#allocation5 + $0x190] sm:$0xff]
    %v116 = vld [vmem:[#allocation5 + $0x198] sm:$0xff]
    %v117 = vld [vmem:[#allocation5 + $0x1a0] sm:$0xff]
    %v118 = vld [vmem:[#allocation5 + $0x1a8] sm:$0xff]
    %v119 = vld [vmem:[#allocation5 + $0x1b0] sm:$0xff]
    %v120 = vld [vmem:[#allocation5 + $0x1b8] sm:$0xff]
    %v121 = vld [vmem:[#allocation5 + $0x1c0] sm:$0xff]
    %v122 = vld [vmem:[#allocation5 + $0x1c8] sm:$0xff]
    %v123 = vld [vmem:[#allocation5 + $0x1d0] sm:$0xff]
    %v124 = vld [vmem:[#allocation5 + $0x1d8] sm:$0xff]
    %v125 = vld [vmem:[#allocation5 + $0x1e0] sm:$0xff]
    %v126 = vld [vmem:[#allocation5 + $0x1e8] sm:$0xff]
    %v127 = vld [vmem:[#allocation5 + $0x1f0] sm:$0xff]
    %v128 = vld [vmem:[#allocation5 + $0x1f8] sm:$0xff]
    %v193 = vunpack.c.l.b16 %v65
    %v194 = vunpack.c.h.b16 %v65
    %v195 = vunpack.c.l.b16 %v66
    %v196 = vunpack.c.h.b16 %v66
    %v197 = vunpack.c.l.b16 %v67
    %v198 = vunpack.c.h.b16 %v67
    %v199 = vunpack.c.l.b16 %v68
    %v200 = vunpack.c.h.b16 %v68
    %v201 = vunpack.c.l.b16 %v69
    %v202 = vunpack.c.h.b16 %v69
    %v203 = vunpack.c.l.b16 %v70
    %v204 = vunpack.c.h.b16 %v70
    %v205 = vunpack.c.l.b16 %v71
    %v206 = vunpack.c.h.b16 %v71
    %v207 = vunpack.c.l.b16 %v72
    %v208 = vunpack.c.h.b16 %v72
    %v209 = vunpack.c.l.b16 %v73
    %v210 = vunpack.c.h.b16 %v73
    %v211 = vunpack.c.l.b16 %v74
    %v212 = vunpack.c.h.b16 %v74
    %v213 = vunpack.c.l.b16 %v75
    %v214 = vunpack.c.h.b16 %v75
    %v215 = vunpack.c.l.b16 %v76
    %v216 = vunpack.c.h.b16 %v76
    %v217 = vunpack.c.l.b16 %v77
    %v218 = vunpack.c.h.b16 %v77
    %v219 = vunpack.c.l.b16 %v78
    %v220 = vunpack.c.h.b16 %v78
    %v221 = vunpack.c.l.b16 %v79
    %v222 = vunpack.c.h.b16 %v79
    %v223 = vunpack.c.l.b16 %v80
    %v224 = vunpack.c.h.b16 %v80
    %v225 = vunpack.c.l.b16 %v81
    %v226 = vunpack.c.h.b16 %v81
    %v227 = vunpack.c.l.b16 %v82
    %v228 = vunpack.c.h.b16 %v82
    %v229 = vunpack.c.l.b16 %v83
    %v230 = vunpack.c.h.b16 %v83
    %v231 = vunpack.c.l.b16 %v84
    %v232 = vunpack.c.h.b16 %v84
    %v233 = vunpack.c.l.b16 %v85
    %v234 = vunpack.c.h.b16 %v85
    %v235 = vunpack.c.l.b16 %v86
    %v236 = vunpack.c.h.b16 %v86
    %v237 = vunpack.c.l.b16 %v87
    %v238 = vunpack.c.h.b16 %v87
    %v239 = vunpack.c.l.b16 %v88
    %v240 = vunpack.c.h.b16 %v88
    %v241 = vunpack.c.l.b16 %v89
    %v242 = vunpack.c.h.b16 %v89
    %v243 = vunpack.c.l.b16 %v90
    %v244 = vunpack.c.h.b16 %v90
    %v245 = vunpack.c.l.b16 %v91
    %v246 = vunpack.c.h.b16 %v91
    %v247 = vunpack.c.l.b16 %v92
    %v248 = vunpack.c.h.b16 %v92
    %v249 = vunpack.c.l.b16 %v93
    %v250 = vunpack.c.h.b16 %v93
    %v251 = vunpack.c.l.b16 %v94
    %v252 = vunpack.c.h.b16 %v94
    %v253 = vunpack.c.l.b16 %v95
    %v254 = vunpack.c.h.b16 %v95
    %v255 = vunpack.c.l.b16 %v96
    %v256 = vunpack.c.h.b16 %v96
    %v257 = vunpack.c.l.b16 %v97
    %v258 = vunpack.c.h.b16 %v97
    %v259 = vunpack.c.l.b16 %v98
    %v260 = vunpack.c.h.b16 %v98
    %v261 = vunpack.c.l.b16 %v99
    %v262 = vunpack.c.h.b16 %v99
    %v263 = vunpack.c.l.b16 %v100
    %v264 = vunpack.c.h.b16 %v100
    %v265 = vunpack.c.l.b16 %v101
    %v266 = vunpack.c.h.b16 %v101
    %v267 = vunpack.c.l.b16 %v102
    %v268 = vunpack.c.h.b16 %v102
    %v269 = vunpack.c.l.b16 %v103
    %v270 = vunpack.c.h.b16 %v103
    %v271 = vunpack.c.l.b16 %v104
    %v272 = vunpack.c.h.b16 %v104
    %v273 = vunpack.c.l.b16 %v105
    %v274 = vunpack.c.h.b16 %v105
    %v275 = vunpack.c.l.b16 %v106
    %v276 = vunpack.c.h.b16 %v106
    %v277 = vunpack.c.l.b16 %v107
    %v278 = vunpack.c.h.b16 %v107
    %v279 = vunpack.c.l.b16 %v108
    %v280 = vunpack.c.h.b16 %v108
    %v281 = vunpack.c.l.b16 %v109
    %v282 = vunpack.c.h.b16 %v109
    %v283 = vunpack.c.l.b16 %v110
    %v284 = vunpack.c.h.b16 %v110
    %v285 = vunpack.c.l.b16 %v111
    %v286 = vunpack.c.h.b16 %v111
    %v287 = vunpack.c.l.b16 %v112
    %v288 = vunpack.c.h.b16 %v112
    %v289 = vunpack.c.l.b16 %v113
    %v290 = vunpack.c.h.b16 %v113
    %v291 = vunpack.c.l.b16 %v114
    %v292 = vunpack.c.h.b16 %v114
    %v293 = vunpack.c.l.b16 %v115
    %v294 = vunpack.c.h.b16 %v115
    %v295 = vunpack.c.l.b16 %v116
    %v296 = vunpack.c.h.b16 %v116
    %v297 = vunpack.c.l.b16 %v117
    %v298 = vunpack.c.h.b16 %v117
    %v299 = vunpack.c.l.b16 %v118
    %v300 = vunpack.c.h.b16 %v118
    %v301 = vunpack.c.l.b16 %v119
    %v302 = vunpack.c.h.b16 %v119
    %v303 = vunpack.c.l.b16 %v120
    %v304 = vunpack.c.h.b16 %v120
    %v305 = vunpack.c.l.b16 %v121
    %v306 = vunpack.c.h.b16 %v121
    %v307 = vunpack.c.l.b16 %v122
    %v308 = vunpack.c.h.b16 %v122
    %v309 = vunpack.c.l.b16 %v123
    %v310 = vunpack.c.h.b16 %v123
    %v311 = vunpack.c.l.b16 %v124
    %v312 = vunpack.c.h.b16 %v124
    %v313 = vunpack.c.l.b16 %v125
    %v314 = vunpack.c.h.b16 %v125
    %v315 = vunpack.c.l.b16 %v126
    %v316 = vunpack.c.h.b16 %v126
    %v317 = vunpack.c.l.b16 %v127
    %v318 = vunpack.c.h.b16 %v127
    %v319 = vunpack.c.l.b16 %v128
    %v320 = vunpack.c.h.b16 %v128
    %v321 = vpack.c.b16 %v201, %v193
    %v322 = vpack.c.b16 %v202, %v194
    %v323 = vpack.c.b16 %v203, %v195
    %v324 = vpack.c.b16 %v204, %v196
    %v325 = vpack.c.b16 %v205, %v197
    %v326 = vpack.c.b16 %v206, %v198
    %v327 = vpack.c.b16 %v207, %v199
    %v328 = vpack.c.b16 %v208, %v200
    %v329 = vpack.c.b16 %v217, %v209
    %v330 = vpack.c.b16 %v218, %v210
    %v331 = vpack.c.b16 %v219, %v211
    %v332 = vpack.c.b16 %v220, %v212
    %v333 = vpack.c.b16 %v221, %v213
    %v334 = vpack.c.b16 %v222, %v214
    %v335 = vpack.c.b16 %v223, %v215
    %v336 = vpack.c.b16 %v224, %v216
    %v337 = vpack.c.b16 %v233, %v225
    %v338 = vpack.c.b16 %v234, %v226
    %v339 = vpack.c.b16 %v235, %v227
    %v340 = vpack.c.b16 %v236, %v228
    %v341 = vpack.c.b16 %v237, %v229
    %v342 = vpack.c.b16 %v238, %v230
    %v343 = vpack.c.b16 %v239, %v231
    %v344 = vpack.c.b16 %v240, %v232
    %v345 = vpack.c.b16 %v249, %v241
    %v346 = vpack.c.b16 %v250, %v242
    %v347 = vpack.c.b16 %v251, %v243
    %v348 = vpack.c.b16 %v252, %v244
    %v349 = vpack.c.b16 %v253, %v245
    %v350 = vpack.c.b16 %v254, %v246
    %v351 = vpack.c.b16 %v255, %v247
    %v352 = vpack.c.b16 %v256, %v248
    %v353 = vpack.c.b16 %v265, %v257
    %v354 = vpack.c.b16 %v266, %v258
    %v355 = vpack.c.b16 %v267, %v259
    %v356 = vpack.c.b16 %v268, %v260
    %v357 = vpack.c.b16 %v269, %v261
    %v358 = vpack.c.b16 %v270, %v262
    %v359 = vpack.c.b16 %v271, %v263
    %v360 = vpack.c.b16 %v272, %v264
    %v361 = vpack.c.b16 %v281, %v273
    %v362 = vpack.c.b16 %v282, %v274
    %v363 = vpack.c.b16 %v283, %v275
    %v364 = vpack.c.b16 %v284, %v276
    %v365 = vpack.c.b16 %v285, %v277
    %v366 = vpack.c.b16 %v286, %v278
    %v367 = vpack.c.b16 %v287, %v279
    %v368 = vpack.c.b16 %v288, %v280
    %v369 = vpack.c.b16 %v297, %v289
    %v370 = vpack.c.b16 %v298, %v290
    %v371 = vpack.c.b16 %v299, %v291
    %v372 = vpack.c.b16 %v300, %v292
    %v373 = vpack.c.b16 %v301, %v293
    %v374 = vpack.c.b16 %v302, %v294
    %v375 = vpack.c.b16 %v303, %v295
    %v376 = vpack.c.b16 %v304, %v296
    %v377 = vpack.c.b16 %v313, %v305
    %v378 = vpack.c.b16 %v314, %v306
    %v379 = vpack.c.b16 %v315, %v307
    %v380 = vpack.c.b16 %v316, %v308
    %v381 = vpack.c.b16 %v317, %v309
    %v382 = vpack.c.b16 %v318, %v310
    %v383 = vpack.c.b16 %v319, %v311
    %v384 = vpack.c.b16 %v320, %v312
    %449 = vmatpush.bf16.msra.mxu0 %v377
    %450 = vmatpush.bf16.msra.mxu0 %v369
    %451 = vmatpush.bf16.msra.mxu0 %v361
    %452 = vmatpush.bf16.msra.mxu0 %v353
    %453 = vmatpush.bf16.msra.mxu0 %v345
    %454 = vmatpush.bf16.msra.mxu0 %v337
    %455 = vmatpush.bf16.msra.mxu0 %v329
    %456 = vmatpush.bf16.msra.mxu0 %v321
    %457 = vmatmul.bf16.gmra.mxu0 %v64
    %v458 = vpop.f32.mrf.mxu0
    %v459 = vadd.f32 0.0, %v458
    %v460 = vpop.f32.mrf.mxu0
    %v461 = vadd.f32 0.0, %v460
    %462 = vdwg.mxu0
    %463 = vmatpush.bf16.msra.mxu0 %v378
    %464 = vmatpush.bf16.msra.mxu0 %v370
    %465 = vmatpush.bf16.msra.mxu0 %v362
    %466 = vmatpush.bf16.msra.mxu0 %v354
    %467 = vmatpush.bf16.msra.mxu0 %v346
    %468 = vmatpush.bf16.msra.mxu0 %v338
    %469 = vmatpush.bf16.msra.mxu0 %v330
    %470 = vmatpush.bf16.msra.mxu0 %v322
    %471 = vmatmul.bf16.gmra.mxu0 %v64
    %v472 = vpop.f32.mrf.mxu0
    %v473 = vadd.f32 0.0, %v472
    %v474 = vpop.f32.mrf.mxu0
    %v475 = vadd.f32 0.0, %v474
    %476 = vdwg.mxu0
    %477 = vmatpush.bf16.msra.mxu0 %v379
    %478 = vmatpush.bf16.msra.mxu0 %v371
    %479 = vmatpush.bf16.msra.mxu0 %v363
    %480 = vmatpush.bf16.msra.mxu0 %v355
    %481 = vmatpush.bf16.msra.mxu0 %v347
    %482 = vmatpush.bf16.msra.mxu0 %v339
    %483 = vmatpush.bf16.msra.mxu0 %v331
    %484 = vmatpush.bf16.msra.mxu0 %v323
    %485 = vmatmul.bf16.gmra.mxu0 %v64
    %v486 = vpop.f32.mrf.mxu0
    %v487 = vadd.f32 0.0, %v486
    %v488 = vpop.f32.mrf.mxu0
    %v489 = vadd.f32 0.0, %v488
    %490 = vdwg.mxu0
    %491 = vmatpush.bf16.msra.mxu0 %v380
    %492 = vmatpush.bf16.msra.mxu0 %v372
    %493 = vmatpush.bf16.msra.mxu0 %v364
    %494 = vmatpush.bf16.msra.mxu0 %v356
    %495 = vmatpush.bf16.msra.mxu0 %v348
    %496 = vmatpush.bf16.msra.mxu0 %v340
    %497 = vmatpush.bf16.msra.mxu0 %v332
    %498 = vmatpush.bf16.msra.mxu0 %v324
    %499 = vmatmul.bf16.gmra.mxu0 %v64
    %v500 = vpop.f32.mrf.mxu0
    %v501 = vadd.f32 0.0, %v500
    %v502 = vpop.f32.mrf.mxu0
    %v503 = vadd.f32 0.0, %v502
    %504 = vdwg.mxu0
    %505 = vmatpush.bf16.msra.mxu0 %v381
    %506 = vmatpush.bf16.msra.mxu0 %v373
    %507 = vmatpush.bf16.msra.mxu0 %v365
    %508 = vmatpush.bf16.msra.mxu0 %v357
    %509 = vmatpush.bf16.msra.mxu0 %v349
    %510 = vmatpush.bf16.msra.mxu0 %v341
    %511 = vmatpush.bf16.msra.mxu0 %v333
    %512 = vmatpush.bf16.msra.mxu0 %v325
    %513 = vmatmul.bf16.gmra.mxu0 %v64
    %v514 = vpop.f32.mrf.mxu0
    %v515 = vadd.f32 0.0, %v514
    %v516 = vpop.f32.mrf.mxu0
    %v517 = vadd.f32 0.0, %v516
    %518 = vdwg.mxu0
    %519 = vmatpush.bf16.msra.mxu0 %v382
    %520 = vmatpush.bf16.msra.mxu0 %v374
    %521 = vmatpush.bf16.msra.mxu0 %v366
    %522 = vmatpush.bf16.msra.mxu0 %v358
    %523 = vmatpush.bf16.msra.mxu0 %v350
    %524 = vmatpush.bf16.msra.mxu0 %v342
    %525 = vmatpush.bf16.msra.mxu0 %v334
    %526 = vmatpush.bf16.msra.mxu0 %v326
    %527 = vmatmul.bf16.gmra.mxu0 %v64
    %v528 = vpop.f32.mrf.mxu0
    %v529 = vadd.f32 0.0, %v528
    %v530 = vpop.f32.mrf.mxu0
    %v531 = vadd.f32 0.0, %v530
    %532 = vdwg.mxu0
    %533 = vmatpush.bf16.msra.mxu0 %v383
    %534 = vmatpush.bf16.msra.mxu0 %v375
    %535 = vmatpush.bf16.msra.mxu0 %v367
    %536 = vmatpush.bf16.msra.mxu0 %v359
    %537 = vmatpush.bf16.msra.mxu0 %v351
    %538 = vmatpush.bf16.msra.mxu0 %v343
    %539 = vmatpush.bf16.msra.mxu0 %v335
    %540 = vmatpush.bf16.msra.mxu0 %v327
    %541 = vmatmul.bf16.gmra.mxu0 %v64
    %v542 = vpop.f32.mrf.mxu0
    %v543 = vadd.f32 0.0, %v542
    %v544 = vpop.f32.mrf.mxu0
    %v545 = vadd.f32 0.0, %v544
    %546 = vdwg.mxu0
    %547 = vmatpush.bf16.msra.mxu0 %v384
    %548 = vmatpush.bf16.msra.mxu0 %v376
    %549 = vmatpush.bf16.msra.mxu0 %v368
    %550 = vmatpush.bf16.msra.mxu0 %v360
    %551 = vmatpush.bf16.msra.mxu0 %v352
    %552 = vmatpush.bf16.msra.mxu0 %v344
    %553 = vmatpush.bf16.msra.mxu0 %v336
    %554 = vmatpush.bf16.msra.mxu0 %v328
    %555 = vmatmul.bf16.gmra.mxu0 %v64
    %v556 = vpop.f32.mrf.mxu0
    %v557 = vadd.f32 0.0, %v556
    %v558 = vpop.f32.mrf.mxu0
    %v559 = vadd.f32 0.0, %v558
    %560 = vdwg.mxu0
    %v561 = vxor.u32 %v459, 2147483648
    %v562 = vxor.u32 %v473, 2147483648
    %v563 = vxor.u32 %v487, 2147483648
    %v564 = vxor.u32 %v501, 2147483648
    %v565 = vxor.u32 %v461, 2147483648
    %v566 = vxor.u32 %v475, 2147483648
    %v567 = vxor.u32 %v489, 2147483648
    %v568 = vxor.u32 %v503, 2147483648
    %v569 = vmul.f32 %v561, 1.442695
    %v570 = vpow.pop %v569
    %v571 = vmul.f32 %v562, 1.442695
    %v572 = vpow.pop %v571
    %v573 = vmul.f32 %v563, 1.442695
    %v574 = vpow.pop %v573
    %v575 = vmul.f32 %v564, 1.442695
    %v576 = vpow.pop %v575
    %v577 = vmul.f32 %v565, 1.442695
    %v578 = vpow.pop %v577
    %v579 = vmul.f32 %v566, 1.442695
    %v580 = vpow.pop %v579
    %v581 = vmul.f32 %v567, 1.442695
    %v582 = vpow.pop %v581
    %v583 = vmul.f32 %v568, 1.442695
    %v584 = vpow.pop %v583
    %v585 = vadd.f32 %v570, 1.0
    %v586 = vadd.f32 %v572, 1.0
    %v587 = vadd.f32 %v574, 1.0
    %v588 = vadd.f32 %v576, 1.0
    %v589 = vadd.f32 %v578, 1.0
    %v590 = vadd.f32 %v580, 1.0
    %v591 = vadd.f32 %v582, 1.0
    %v592 = vadd.f32 %v584, 1.0
    %v593 = vrcp.pop %v585
    %v594 = vmul.f32 %v585, %v593
    %v595 = vsub.f32 1.0, %v594
    %v596 = vmul.f32 %v593, %v595
    %v597 = vadd.f32 %v593, %v596
    %vm598 = vweird.f32 %v585
    %vm599 = vweird.f32 %v593
    %vm600 = vmor %vm598, %vm599
    %v601 = vsel %vm600, %v593, %v597
    %v602 = vand.u32 2147483647, %v585
    %vm603 = vcmp.eq.f32.partialorder %v602, 8.507059e+37
    %v604 = vand.u32 %v585, 2147483648
    %v605 = vor.u32 1.1754944e-38, %v604
    %v606 = vsel %vm603, %v605, %v601
    %v607 = vmul.f32 1.0, %v606
    %v608 = vrcp.pop %v586
    %v609 = vmul.f32 %v586, %v608
    %v610 = vsub.f32 1.0, %v609
    %v611 = vmul.f32 %v608, %v610
    %v612 = vadd.f32 %v608, %v611
    %vm613 = vweird.f32 %v586
    %vm614 = vweird.f32 %v608
    %vm615 = vmor %vm613, %vm614
    %v616 = vsel %vm615, %v608, %v612
    %v617 = vand.u32 2147483647, %v586
    %vm618 = vcmp.eq.f32.partialorder %v617, 8.507059e+37
    %v619 = vand.u32 %v586, 2147483648
    %v620 = vor.u32 1.1754944e-38, %v619
    %v621 = vsel %vm618, %v620, %v616
    %v622 = vmul.f32 1.0, %v621
    %v623 = vrcp.pop %v587
    %v624 = vmul.f32 %v587, %v623
    %v625 = vsub.f32 1.0, %v624
    %v626 = vmul.f32 %v623, %v625
    %v627 = vadd.f32 %v623, %v626
    %vm628 = vweird.f32 %v587
    %vm629 = vweird.f32 %v623
    %vm630 = vmor %vm628, %vm629
    %v631 = vsel %vm630, %v623, %v627
    %v632 = vand.u32 2147483647, %v587
    %vm633 = vcmp.eq.f32.partialorder %v632, 8.507059e+37
    %v634 = vand.u32 %v587, 2147483648
    %v635 = vor.u32 1.1754944e-38, %v634
    %v636 = vsel %vm633, %v635, %v631
    %v637 = vmul.f32 1.0, %v636
    %v638 = vrcp.pop %v588
    %v639 = vmul.f32 %v588, %v638
    %v640 = vsub.f32 1.0, %v639
    %v641 = vmul.f32 %v638, %v640
    %v642 = vadd.f32 %v638, %v641
    %vm643 = vweird.f32 %v588
    %vm644 = vweird.f32 %v638
    %vm645 = vmor %vm643, %vm644
    %v646 = vsel %vm645, %v638, %v642
    %v647 = vand.u32 2147483647, %v588
    %vm648 = vcmp.eq.f32.partialorder %v647, 8.507059e+37
    %v649 = vand.u32 %v588, 2147483648
    %v650 = vor.u32 1.1754944e-38, %v649
    %v651 = vsel %vm648, %v650, %v646
    %v652 = vmul.f32 1.0, %v651
    %v653 = vrcp.pop %v589
    %v654 = vmul.f32 %v589, %v653
    %v655 = vsub.f32 1.0, %v654
    %v656 = vmul.f32 %v653, %v655
    %v657 = vadd.f32 %v653, %v656
    %vm658 = vweird.f32 %v589
    %vm659 = vweird.f32 %v653
    %vm660 = vmor %vm658, %vm659
    %v661 = vsel %vm660, %v653, %v657
    %v662 = vand.u32 2147483647, %v589
    %vm663 = vcmp.eq.f32.partialorder %v662, 8.507059e+37
    %v664 = vand.u32 %v589, 2147483648
    %v665 = vor.u32 1.1754944e-38, %v664
    %v666 = vsel %vm663, %v665, %v661
    %v667 = vmul.f32 1.0, %v666
    %v668 = vrcp.pop %v590
    %v669 = vmul.f32 %v590, %v668
    %v670 = vsub.f32 1.0, %v669
    %v671 = vmul.f32 %v668, %v670
    %v672 = vadd.f32 %v668, %v671
    %vm673 = vweird.f32 %v590
    %vm674 = vweird.f32 %v668
    %vm675 = vmor %vm673, %vm674
    %v676 = vsel %vm675, %v668, %v672
    %v677 = vand.u32 2147483647, %v590
    %vm678 = vcmp.eq.f32.partialorder %v677, 8.507059e+37
    %v679 = vand.u32 %v590, 2147483648
    %v680 = vor.u32 1.1754944e-38, %v679
    %v681 = vsel %vm678, %v680, %v676
    %v682 = vmul.f32 1.0, %v681
    %v683 = vrcp.pop %v591
    %v684 = vmul.f32 %v591, %v683
    %v685 = vsub.f32 1.0, %v684
    %v686 = vmul.f32 %v683, %v685
    %v687 = vadd.f32 %v683, %v686
    %vm688 = vweird.f32 %v591
    %vm689 = vweird.f32 %v683
    %vm690 = vmor %vm688, %vm689
    %v691 = vsel %vm690, %v683, %v687
    %v692 = vand.u32 2147483647, %v591
    %vm693 = vcmp.eq.f32.partialorder %v692, 8.507059e+37
    %v694 = vand.u32 %v591, 2147483648
    %v695 = vor.u32 1.1754944e-38, %v694
    %v696 = vsel %vm693, %v695, %v691
    %v697 = vmul.f32 1.0, %v696
    %v698 = vrcp.pop %v592
    %v699 = vmul.f32 %v592, %v698
    %v700 = vsub.f32 1.0, %v699
    %v701 = vmul.f32 %v698, %v700
    %v702 = vadd.f32 %v698, %v701
    %vm703 = vweird.f32 %v592
    %vm704 = vweird.f32 %v698
    %vm705 = vmor %vm703, %vm704
    %v706 = vsel %vm705, %v698, %v702
    %v707 = vand.u32 2147483647, %v592
    %vm708 = vcmp.eq.f32.partialorder %v707, 8.507059e+37
    %v709 = vand.u32 %v592, 2147483648
    %v710 = vor.u32 1.1754944e-38, %v709
    %v711 = vsel %vm708, %v710, %v706
    %v712 = vmul.f32 1.0, %v711
    %v713 = vmul.f32 %v459, %v607
    %v714 = vmul.f32 %v473, %v622
    %v715 = vmul.f32 %v487, %v637
    %v716 = vmul.f32 %v501, %v652
    %v717 = vmul.f32 %v461, %v667
    %v718 = vmul.f32 %v475, %v682
    %v719 = vmul.f32 %v489, %v697
    %v720 = vmul.f32 %v503, %v712
    %v721 = vmul.f32 %v713, %v515
    %v722 = vmul.f32 %v714, %v529
    %v723 = vmul.f32 %v715, %v543
    %v724 = vmul.f32 %v716, %v557
    %v725 = vmul.f32 %v717, %v517
    %v726 = vmul.f32 %v718, %v531
    %v727 = vmul.f32 %v719, %v545
    %v728 = vmul.f32 %v720, %v559
    %v729 = vpack.c.bf16 %v725, %v721
    %v730 = vpack.c.bf16 %v726, %v722
    %v731 = vpack.c.bf16 %v727, %v723
    %v732 = vpack.c.bf16 %v728, %v724
    %v733 = vld [vmem:[#allocation7] sm:$0xf]
    %v734 = vld [vmem:[#allocation7 + $0x4] sm:$0xf]
    %v735 = vld [vmem:[#allocation7 + $0x8] sm:$0xf]
    %v736 = vld [vmem:[#allocation7 + $0xc] sm:$0xf]
    %v737 = vld [vmem:[#allocation7 + $0x10] sm:$0xf]
    %v738 = vld [vmem:[#allocation7 + $0x14] sm:$0xf]
    %v739 = vld [vmem:[#allocation7 + $0x18] sm:$0xf]
    %v740 = vld [vmem:[#allocation7 + $0x1c] sm:$0xf]
    %v741 = vld [vmem:[#allocation7 + $0x20] sm:$0xf]
    %v742 = vld [vmem:[#allocation7 + $0x24] sm:$0xf]
    %v743 = vld [vmem:[#allocation7 + $0x28] sm:$0xf]
    %v744 = vld [vmem:[#allocation7 + $0x2c] sm:$0xf]
    %v745 = vld [vmem:[#allocation7 + $0x30] sm:$0xf]
    %v746 = vld [vmem:[#allocation7 + $0x34] sm:$0xf]
    %v747 = vld [vmem:[#allocation7 + $0x38] sm:$0xf]
    %v748 = vld [vmem:[#allocation7 + $0x3c] sm:$0xf]
    %v749 = vld [vmem:[#allocation7 + $0x40] sm:$0xf]
    %v750 = vld [vmem:[#allocation7 + $0x44] sm:$0xf]
    %v751 = vld [vmem:[#allocation7 + $0x48] sm:$0xf]
    %v752 = vld [vmem:[#allocation7 + $0x4c] sm:$0xf]
    %v753 = vld [vmem:[#allocation7 + $0x50] sm:$0xf]
    %v754 = vld [vmem:[#allocation7 + $0x54] sm:$0xf]
    %v755 = vld [vmem:[#allocation7 + $0x58] sm:$0xf]
    %v756 = vld [vmem:[#allocation7 + $0x5c] sm:$0xf]
    %v757 = vld [vmem:[#allocation7 + $0x60] sm:$0xf]
    %v758 = vld [vmem:[#allocation7 + $0x64] sm:$0xf]
    %v759 = vld [vmem:[#allocation7 + $0x68] sm:$0xf]
    %v760 = vld [vmem:[#allocation7 + $0x6c] sm:$0xf]
    %v761 = vld [vmem:[#allocation7 + $0x70] sm:$0xf]
    %v762 = vld [vmem:[#allocation7 + $0x74] sm:$0xf]
    %v763 = vld [vmem:[#allocation7 + $0x78] sm:$0xf]
    %v764 = vld [vmem:[#allocation7 + $0x7c] sm:$0xf]
    %v765 = vld [vmem:[#allocation7 + $0x80] sm:$0xf]
    %v766 = vld [vmem:[#allocation7 + $0x84] sm:$0xf]
    %v767 = vld [vmem:[#allocation7 + $0x88] sm:$0xf]
    %v768 = vld [vmem:[#allocation7 + $0x8c] sm:$0xf]
    %v769 = vld [vmem:[#allocation7 + $0x90] sm:$0xf]
    %v770 = vld [vmem:[#allocation7 + $0x94] sm:$0xf]
    %v771 = vld [vmem:[#allocation7 + $0x98] sm:$0xf]
    %v772 = vld [vmem:[#allocation7 + $0x9c] sm:$0xf]
    %v773 = vld [vmem:[#allocation7 + $0xa0] sm:$0xf]
    %v774 = vld [vmem:[#allocation7 + $0xa4] sm:$0xf]
    %v775 = vld [vmem:[#allocation7 + $0xa8] sm:$0xf]
    %v776 = vld [vmem:[#allocation7 + $0xac] sm:$0xf]
    %v777 = vld [vmem:[#allocation7 + $0xb0] sm:$0xf]
    %v778 = vld [vmem:[#allocation7 + $0xb4] sm:$0xf]
    %v779 = vld [vmem:[#allocation7 + $0xb8] sm:$0xf]
    %v780 = vld [vmem:[#allocation7 + $0xbc] sm:$0xf]
    %v781 = vld [vmem:[#allocation7 + $0xc0] sm:$0xf]
    %v782 = vld [vmem:[#allocation7 + $0xc4] sm:$0xf]
    %v783 = vld [vmem:[#allocation7 + $0xc8] sm:$0xf]
    %v784 = vld [vmem:[#allocation7 + $0xcc] sm:$0xf]
    %v785 = vld [vmem:[#allocation7 + $0xd0] sm:$0xf]
    %v786 = vld [vmem:[#allocation7 + $0xd4] sm:$0xf]
    %v787 = vld [vmem:[#allocation7 + $0xd8] sm:$0xf]
    %v788 = vld [vmem:[#allocation7 + $0xdc] sm:$0xf]
    %v789 = vld [vmem:[#allocation7 + $0xe0] sm:$0xf]
    %v790 = vld [vmem:[#allocation7 + $0xe4] sm:$0xf]
    %v791 = vld [vmem:[#allocation7 + $0xe8] sm:$0xf]
    %v792 = vld [vmem:[#allocation7 + $0xec] sm:$0xf]
    %v793 = vld [vmem:[#allocation7 + $0xf0] sm:$0xf]
    %v794 = vld [vmem:[#allocation7 + $0xf4] sm:$0xf]
    %v795 = vld [vmem:[#allocation7 + $0xf8] sm:$0xf]
    %v796 = vld [vmem:[#allocation7 + $0xfc] sm:$0xf]
    %v861 = vunpack.c.l.b16 %v733
    %v862 = vunpack.c.l.b16 %v734
    %v863 = vunpack.c.l.b16 %v735
    %v864 = vunpack.c.l.b16 %v736
    %v865 = vunpack.c.l.b16 %v737
    %v866 = vunpack.c.l.b16 %v738
    %v867 = vunpack.c.l.b16 %v739
    %v868 = vunpack.c.l.b16 %v740
    %v869 = vunpack.c.l.b16 %v741
    %v870 = vunpack.c.l.b16 %v742
    %v871 = vunpack.c.l.b16 %v743
    %v872 = vunpack.c.l.b16 %v744
    %v873 = vunpack.c.l.b16 %v745
    %v874 = vunpack.c.l.b16 %v746
    %v875 = vunpack.c.l.b16 %v747
    %v876 = vunpack.c.l.b16 %v748
    %v877 = vunpack.c.l.b16 %v749
    %v878 = vunpack.c.l.b16 %v750
    %v879 = vunpack.c.l.b16 %v751
    %v880 = vunpack.c.l.b16 %v752
    %v881 = vunpack.c.l.b16 %v753
    %v882 = vunpack.c.l.b16 %v754
    %v883 = vunpack.c.l.b16 %v755
    %v884 = vunpack.c.l.b16 %v756
    %v885 = vunpack.c.l.b16 %v757
    %v886 = vunpack.c.l.b16 %v758
    %v887 = vunpack.c.l.b16 %v759
    %v888 = vunpack.c.l.b16 %v760
    %v889 = vunpack.c.l.b16 %v761
    %v890 = vunpack.c.l.b16 %v762
    %v891 = vunpack.c.l.b16 %v763
    %v892 = vunpack.c.l.b16 %v764
    %v893 = vunpack.c.l.b16 %v765
    %v894 = vunpack.c.l.b16 %v766
    %v895 = vunpack.c.l.b16 %v767
    %v896 = vunpack.c.l.b16 %v768
    %v897 = vunpack.c.l.b16 %v769
    %v898 = vunpack.c.l.b16 %v770
    %v899 = vunpack.c.l.b16 %v771
    %v900 = vunpack.c.l.b16 %v772
    %v901 = vunpack.c.l.b16 %v773
    %v902 = vunpack.c.l.b16 %v774
    %v903 = vunpack.c.l.b16 %v775
    %v904 = vunpack.c.l.b16 %v776
    %v905 = vunpack.c.l.b16 %v777
    %v906 = vunpack.c.l.b16 %v778
    %v907 = vunpack.c.l.b16 %v779
    %v908 = vunpack.c.l.b16 %v780
    %v909 = vunpack.c.l.b16 %v781
    %v910 = vunpack.c.l.b16 %v782
    %v911 = vunpack.c.l.b16 %v783
    %v912 = vunpack.c.l.b16 %v784
    %v913 = vunpack.c.l.b16 %v785
    %v914 = vunpack.c.l.b16 %v786
    %v915 = vunpack.c.l.b16 %v787
    %v916 = vunpack.c.l.b16 %v788
    %v917 = vunpack.c.l.b16 %v789
    %v918 = vunpack.c.l.b16 %v790
    %v919 = vunpack.c.l.b16 %v791
    %v920 = vunpack.c.l.b16 %v792
    %v921 = vunpack.c.l.b16 %v793
    %v922 = vunpack.c.l.b16 %v794
    %v923 = vunpack.c.l.b16 %v795
    %v924 = vunpack.c.l.b16 %v796
    %v925 = vpack.c.b16 %v862, %v861
    %v926 = vpack.c.b16 %v864, %v863
    %v927 = vpack.c.b16 %v866, %v865
    %v928 = vpack.c.b16 %v868, %v867
    %v929 = vpack.c.b16 %v870, %v869
    %v930 = vpack.c.b16 %v872, %v871
    %v931 = vpack.c.b16 %v874, %v873
    %v932 = vpack.c.b16 %v876, %v875
    %v933 = vpack.c.b16 %v878, %v877
    %v934 = vpack.c.b16 %v880, %v879
    %v935 = vpack.c.b16 %v882, %v881
    %v936 = vpack.c.b16 %v884, %v883
    %v937 = vpack.c.b16 %v886, %v885
    %v938 = vpack.c.b16 %v888, %v887
    %v939 = vpack.c.b16 %v890, %v889
    %v940 = vpack.c.b16 %v892, %v891
    %v941 = vpack.c.b16 %v894, %v893
    %v942 = vpack.c.b16 %v896, %v895
    %v943 = vpack.c.b16 %v898, %v897
    %v944 = vpack.c.b16 %v900, %v899
    %v945 = vpack.c.b16 %v902, %v901
    %v946 = vpack.c.b16 %v904, %v903
    %v947 = vpack.c.b16 %v906, %v905
    %v948 = vpack.c.b16 %v908, %v907
    %v949 = vpack.c.b16 %v910, %v909
    %v950 = vpack.c.b16 %v912, %v911
    %v951 = vpack.c.b16 %v914, %v913
    %v952 = vpack.c.b16 %v916, %v915
    %v953 = vpack.c.b16 %v918, %v917
    %v954 = vpack.c.b16 %v920, %v919
    %v955 = vpack.c.b16 %v922, %v921
    %v956 = vpack.c.b16 %v924, %v923
    %989 = vmatpush.bf16.msra.mxu0 %v932
    %990 = vmatpush.bf16.msra.mxu0 %v931
    %991 = vmatpush.bf16.msra.mxu0 %v930
    %992 = vmatpush.bf16.msra.mxu0 %v929
    %993 = vmatpush.bf16.msra.mxu0 %v928
    %994 = vmatpush.bf16.msra.mxu0 %v927
    %995 = vmatpush.bf16.msra.mxu0 %v926
    %996 = vmatpush.bf16.msra.mxu0 %v925
    %997 = vmatmul.bf16.gmra.mxu0 %v729
    %v998 = vpop.f32.mrf.mxu0
    %v999 = vadd.f32 0.0, %v998
    %v1000 = vpop.f32.mrf.mxu0
    %v1001 = vadd.f32 0.0, %v1000
    %1002 = vdwg.mxu0
    %1003 = vmatpush.bf16.msra.mxu0 %v940
    %1004 = vmatpush.bf16.msra.mxu0 %v939
    %1005 = vmatpush.bf16.msra.mxu0 %v938
    %1006 = vmatpush.bf16.msra.mxu0 %v937
    %1007 = vmatpush.bf16.msra.mxu0 %v936
    %1008 = vmatpush.bf16.msra.mxu0 %v935
    %1009 = vmatpush.bf16.msra.mxu0 %v934
    %1010 = vmatpush.bf16.msra.mxu0 %v933
    %1011 = vmatmul.bf16.gmra.mxu0 %v730
    %v1012 = vpop.f32.mrf.mxu0
    %v1013 = vadd.f32 %v999, %v1012
    %v1014 = vpop.f32.mrf.mxu0
    %v1015 = vadd.f32 %v1001, %v1014
    %1016 = vdwg.mxu0
    %1017 = vmatpush.bf16.msra.mxu0 %v948
    %1018 = vmatpush.bf16.msra.mxu0 %v947
    %1019 = vmatpush.bf16.msra.mxu0 %v946
    %1020 = vmatpush.bf16.msra.mxu0 %v945
    %1021 = vmatpush.bf16.msra.mxu0 %v944
    %1022 = vmatpush.bf16.msra.mxu0 %v943
    %1023 = vmatpush.bf16.msra.mxu0 %v942
    %1024 = vmatpush.bf16.msra.mxu0 %v941
    %1025 = vmatmul.bf16.gmra.mxu0 %v731
    %v1026 = vpop.f32.mrf.mxu0
    %v1027 = vadd.f32 %v1013, %v1026
    %v1028 = vpop.f32.mrf.mxu0
    %v1029 = vadd.f32 %v1015, %v1028
    %1030 = vdwg.mxu0
    %1031 = vmatpush.bf16.msra.mxu0 %v956
    %1032 = vmatpush.bf16.msra.mxu0 %v955
    %1033 = vmatpush.bf16.msra.mxu0 %v954
    %1034 = vmatpush.bf16.msra.mxu0 %v953
    %1035 = vmatpush.bf16.msra.mxu0 %v952
    %1036 = vmatpush.bf16.msra.mxu0 %v951
    %1037 = vmatpush.bf16.msra.mxu0 %v950
    %1038 = vmatpush.bf16.msra.mxu0 %v949
    %1039 = vmatmul.bf16.gmra.mxu0 %v732
    %v1040 = vpop.f32.mrf.mxu0
    %v1041 = vadd.f32 %v1027, %v1040
    %v1042 = vpop.f32.mrf.mxu0
    %v1043 = vadd.f32 %v1029, %v1042
    %1044 = vdwg.mxu0
    %1045 = vst [vmem:[#allocation8] sm:$0xff] %v1041
    %1046 = vst [vmem:[#allocation8 + $0x8] sm:$0xff] %v1043
    // Predicated region
    $region26: #{tpu_custom_call.1} parent=1 // pred_check
      _
    $region27: #{tpu_custom_call.1} parent=1 // pred_check_branch
      %1048 = sbr.rel (0) target = $region29
    $region28: #{tpu_custom_call.1} parent=1 // pred_region
      %1050 = vsyncadd [#allocation4], 0
      %s1051 = sshll.u32 [#allocation8], 4
      %s1052 = int_to_ptr.vmem [resolvable:$true] %s1051
      %s1053 = sshll.u32 %s3, 4
      %s1054 = int_to_ptr.hbm [resolvable:$true] %s1053
      %1059 = dma.vmem_to_hbm [thread:$0]  %s1052, 256, %s1054, [#allocation4], 128, 128, 8
    $region29: #{tpu_custom_call.1} parent=1 // pred_fallthru
      _
    // Predicated region
    $region30: #{tpu_custom_call.1} parent=1 // pred_check
      _
    $region31: #{tpu_custom_call.1} parent=1 // pred_check_branch
      %1061 = sbr.rel (0) target = $region33
    $region32: #{tpu_custom_call.1} parent=1 // pred_region
      %1063 = dma.done [#allocation4], 256
    $region33: #{tpu_custom_call.1} parent=1 // pred_fallthru
      _
    %1064 = vsyncpa [#allocation3], 1
    %1065 = vsyncpa [#allocation6], 1
    %1066 = vsyncpa [#allocation4], 1

</llo_original>
